<compile_context>
chip_gen: v7x
topology: tpu7x:2x2x1
jax: 0.10.0
libtpu: 0.0.40
codegen_flags: <defaults>
</compile_context>

<pallas_src>
import functools

import jax
import jax.numpy as jnp
from jax.experimental import pallas as pl
from jax.experimental.pallas import tpu as pltpu


def _bn_stats_kernel(x_ref, gamma_ref, beta_ref, scale_ref, shift_ref,
                     acc_sum, acc_sq, *, inv_n, eps):
    i = pl.program_id(0)

    @pl.when(i == 0)
    def _():
        acc_sum[...] = jnp.zeros_like(acc_sum)
        acc_sq[...] = jnp.zeros_like(acc_sq)

    x = x_ref[...].astype(jnp.float32)
    acc_sum[...] += jnp.sum(x, axis=0, keepdims=True)
    acc_sq[...] += jnp.sum(x * x, axis=0, keepdims=True)

    @pl.when(i == pl.num_programs(0) - 1)
    def _():
        mean = acc_sum[...] * inv_n
        var = acc_sq[...] * inv_n - mean * mean  # biased variance (training BN)
        inv_std = jax.lax.rsqrt(var + eps)
        scale = gamma_ref[...].astype(jnp.float32) * inv_std
        scale_ref[...] = scale
        shift_ref[...] = beta_ref[...].astype(jnp.float32) - mean * scale


def _bn_apply_kernel(x_ref, scale_ref, shift_ref, o_ref):
    x = x_ref[...].astype(jnp.float32)
    o_ref[...] = (x * scale_ref[...] + shift_ref[...]).astype(o_ref.dtype)


@functools.partial(jax.jit, static_argnames=("eps", "row_tile"))
def link_batch_norm(x, gamma, beta, *, eps=1e-5, row_tile=512):
    """LinkBatchNorm forward.  x: (B, L, C); gamma, beta: (C,)."""
    B, L, C = x.shape
    N = B * L
    xf = x.reshape(N, C)

    # Row tile: big enough to amortize per-grid-step overhead, sublane(8)
    # aligned, never larger than the (8-padded) row count.
    n_pad8 = ((N + 7) // 8) * 8
    tile = min(int(row_tile), n_pad8)
    n_padded = ((N + tile - 1) // tile) * tile
    if n_padded != N:
        # Zero rows add nothing to sum / sum-of-squares; we divide by the true
        # N below, so the statistics remain exact.
        xf = jnp.pad(xf, ((0, n_padded - N), (0, 0)))

    grid = (n_padded // tile,)
    gamma2 = gamma.reshape(1, C)
    beta2 = beta.reshape(1, C)

    # ---- Pass 1: per-channel stats -> fused per-channel scale & shift. ----
    stats_kernel = functools.partial(
        _bn_stats_kernel, inv_n=1.0 / float(N), eps=float(eps))
    scale, shift = pl.pallas_call(
        stats_kernel,
        out_shape=(
            jax.ShapeDtypeStruct((1, C), jnp.float32),
            jax.ShapeDtypeStruct((1, C), jnp.float32),
        ),
        grid=grid,
        in_specs=[
            pl.BlockSpec((tile, C), lambda i: (i, 0)),
            pl.BlockSpec((1, C), lambda i: (0, 0)),
            pl.BlockSpec((1, C), lambda i: (0, 0)),
        ],
        out_specs=(
            pl.BlockSpec((1, C), lambda i: (0, 0)),
            pl.BlockSpec((1, C), lambda i: (0, 0)),
        ),
        scratch_shapes=[
            pltpu.VMEM((1, C), jnp.float32),
            pltpu.VMEM((1, C), jnp.float32),
        ],
        compiler_params=pltpu.CompilerParams(
            dimension_semantics=("arbitrary",),
        ),
    )(xf, gamma2, beta2)

    # ---- Pass 2: y = x * scale + shift, row-tiled, parallel over tiles. ----
    out = pl.pallas_call(
        _bn_apply_kernel,
        out_shape=jax.ShapeDtypeStruct((n_padded, C), x.dtype),
        grid=grid,
        in_specs=[
            pl.BlockSpec((tile, C), lambda i: (i, 0)),
            pl.BlockSpec((1, C), lambda i: (0, 0)),
            pl.BlockSpec((1, C), lambda i: (0, 0)),
        ],
        out_specs=pl.BlockSpec((tile, C), lambda i: (i, 0)),
        compiler_params=pltpu.CompilerParams(
            dimension_semantics=("parallel",),
        ),
    )(xf, scale, shift)

    # TODO(synk): running_mean/running_var momentum updates (a training-time
    # side effect of nn.BatchNorm1d) are not modeled; they do not affect the
    # returned forward value.
    return out[:N].reshape(B, L, C)


def reference_forward(x, gamma, beta, eps=1e-5):
    mean = x.mean(axis=(0, 1))
    var = x.var(axis=(0, 1))  # biased variance, as used by training-mode BN
    xhat = (x - mean) * jax.lax.rsqrt(var + eps)
    return xhat * gamma + beta


if __name__ == "__main__":
    # Small shapes: batch=3, seq=10, dim=128 (dim on the lane axis; the odd
    # row count 3*10=30 exercises the zero-padding path).
    batch, seq, dim = 3, 10, 128

    key = jax.random.PRNGKey(0)
    k_x, k_g, k_b = jax.random.split(key, 3)
    x = jax.random.normal(k_x, (batch, seq, dim), jnp.float32)
    # A fresh nn.BatchNorm1d has gamma=1, beta=0; use random affine params so
    # the scale/shift path is exercised (same forward math either way).
    gamma = 1.0 + 0.1 * jax.random.normal(k_g, (dim,), jnp.float32)
    beta = 0.1 * jax.random.normal(k_b, (dim,), jnp.float32)

    out = link_batch_norm(x, gamma, beta)
    out = jax.block_until_ready(out)

    ref = reference_forward(x, gamma, beta)
    assert out.shape == (batch, seq, dim)
    assert jnp.allclose(out, ref, atol=1e-4, rtol=1e-4), "mismatch vs JAX reference"

    print("KERNEL_OK")
</pallas_src>

<mosaic_0001>
module attributes {stable_mosaic.version = 11 : i64} {
  func.func @_bn_stats_kernel(%arg0: i32, %arg1: memref<32x128xf32, #tpu.memory_space<vmem>>, %arg2: memref<1x128xf32, #tpu.memory_space<vmem>>, %arg3: memref<1x128xf32, #tpu.memory_space<vmem>>, %arg4: memref<1x128xf32, #tpu.memory_space<vmem>>, %arg5: memref<1x128xf32, #tpu.memory_space<vmem>>, %arg6: memref<1x128xf32, #tpu.memory_space<vmem>>, %arg7: memref<1x128xf32, #tpu.memory_space<vmem>>) attributes {dimension_semantics = [#tpu.dimension_semantics<arbitrary>], iteration_bounds = array<i64: 1>, scalar_prefetch = 0 : i64, scratch_operands = 2 : i64, tpu.core_type = #tpu.core_type<tc>, window_params = [{transform_indices = @transform_0, window_bounds = array<i64: 32, 128>}, {pipeline_mode = #tpu.pipeline_mode<synchronous>, transform_indices = @transform_1, window_bounds = array<i64: 1, 128>}, {pipeline_mode = #tpu.pipeline_mode<synchronous>, transform_indices = @transform_2, window_bounds = array<i64: 1, 128>}, {pipeline_mode = #tpu.pipeline_mode<synchronous>, transform_indices = @transform_3, window_bounds = array<i64: 1, 128>}, {pipeline_mode = #tpu.pipeline_mode<synchronous>, transform_indices = @transform_4, window_bounds = array<i64: 1, 128>}]} {
    %c0_i32 = arith.constant 0 : i32
    %0 = arith.cmpi eq, %arg0, %c0_i32 : i32
    %1 = arith.extui %0 : i1 to i32
    %c0_i32_0 = arith.constant 0 : i32
    %2 = arith.cmpi ne, %1, %c0_i32_0 : i32
    scf.if %2 {
      %cst_13 = arith.constant 0.000000e+00 : f32
      %18 = vector.broadcast %cst_13 : f32 to vector<1x128xf32>
      %c0_14 = arith.constant 0 : index
      %c0_15 = arith.constant 0 : index
      %19 = vector.load %arg6[%c0_14, %c0_15] : memref<1x128xf32, #tpu.memory_space<vmem>>, vector<1x128xf32>
      tpu.vector_store %arg6[%c0_14, %c0_15], %18 {strides = array<i32>} : memref<1x128xf32, #tpu.memory_space<vmem>>, vector<1x128xf32>,
      %cst_16 = arith.constant 0.000000e+00 : f32
      %20 = vector.broadcast %cst_16 : f32 to vector<1x128xf32>
      %c0_17 = arith.constant 0 : index
      %c0_18 = arith.constant 0 : index
      %21 = vector.load %arg7[%c0_17, %c0_18] : memref<1x128xf32, #tpu.memory_space<vmem>>, vector<1x128xf32>
      tpu.vector_store %arg7[%c0_17, %c0_18], %20 {strides = array<i32>} : memref<1x128xf32, #tpu.memory_space<vmem>>, vector<1x128xf32>,
    } else {
    }
    %c0 = arith.constant 0 : index
    %c0_1 = arith.constant 0 : index
    %3 = vector.load %arg1[%c0, %c0_1] : memref<32x128xf32, #tpu.memory_space<vmem>>, vector<32x128xf32>
    %c0_2 = arith.constant 0 : index
    %c0_3 = arith.constant 0 : index
    %4 = vector.load %arg6[%c0_2, %c0_3] : memref<1x128xf32, #tpu.memory_space<vmem>>, vector<1x128xf32>
    %cst = arith.constant dense<0.000000e+00> : vector<128xf32>
    %5 = vector.multi_reduction <add>, %3, %cst [0] : vector<32x128xf32> to vector<128xf32>
    %6 = vector.shape_cast %5 : vector<128xf32> to vector<1x128xf32>
    %7 = arith.addf %4, %6 : vector<1x128xf32>
    %c0_4 = arith.constant 0 : index
    %c0_5 = arith.constant 0 : index
    %8 = vector.load %arg6[%c0_4, %c0_5] : memref<1x128xf32, #tpu.memory_space<vmem>>, vector<1x128xf32>
    tpu.vector_store %arg6[%c0_4, %c0_5], %7 {strides = array<i32>} : memref<1x128xf32, #tpu.memory_space<vmem>>, vector<1x128xf32>,
    %c0_6 = arith.constant 0 : index
    %c0_7 = arith.constant 0 : index
    %9 = vector.load %arg7[%c0_6, %c0_7] : memref<1x128xf32, #tpu.memory_space<vmem>>, vector<1x128xf32>
    %10 = arith.mulf %3, %3 : vector<32x128xf32>
    %cst_8 = arith.constant dense<0.000000e+00> : vector<128xf32>
    %11 = vector.multi_reduction <add>, %10, %cst_8 [0] : vector<32x128xf32> to vector<128xf32>
    %12 = vector.shape_cast %11 : vector<128xf32> to vector<1x128xf32>
    %13 = arith.addf %9, %12 : vector<1x128xf32>
    %c0_9 = arith.constant 0 : index
    %c0_10 = arith.constant 0 : index
    %14 = vector.load %arg7[%c0_9, %c0_10] : memref<1x128xf32, #tpu.memory_space<vmem>>, vector<1x128xf32>
    tpu.vector_store %arg7[%c0_9, %c0_10], %13 {strides = array<i32>} : memref<1x128xf32, #tpu.memory_space<vmem>>, vector<1x128xf32>,
    %c0_i32_11 = arith.constant 0 : i32
    %15 = arith.cmpi eq, %arg0, %c0_i32_11 : i32
    %16 = arith.extui %15 : i1 to i32
    %c0_i32_12 = arith.constant 0 : i32
    %17 = arith.cmpi ne, %16, %c0_i32_12 : i32
    scf.if %17 {
      %c0_13 = arith.constant 0 : index
      %c0_14 = arith.constant 0 : index
      %18 = vector.load %arg6[%c0_13, %c0_14] : memref<1x128xf32, #tpu.memory_space<vmem>>, vector<1x128xf32>
      %cst_15 = arith.constant 0.0333333351 : f32
      %19 = vector.broadcast %cst_15 : f32 to vector<1x128xf32>
      %20 = arith.mulf %18, %19 : vector<1x128xf32>
      %c0_16 = arith.constant 0 : index
      %c0_17 = arith.constant 0 : index
      %21 = vector.load %arg7[%c0_16, %c0_17] : memref<1x128xf32, #tpu.memory_space<vmem>>, vector<1x128xf32>
      %cst_18 = arith.constant 0.0333333351 : f32
      %22 = vector.broadcast %cst_18 : f32 to vector<1x128xf32>
      %23 = arith.mulf %21, %22 : vector<1x128xf32>
      %24 = arith.mulf %20, %20 : vector<1x128xf32>
      %25 = arith.subf %23, %24 : vector<1x128xf32>
      %cst_19 = arith.constant 9.99999974E-6 : f32
      %26 = vector.broadcast %cst_19 : f32 to vector<1x128xf32>
      %27 = arith.addf %25, %26 : vector<1x128xf32>
      %28 = math.rsqrt %27 : vector<1x128xf32>
      %c0_20 = arith.constant 0 : index
      %c0_21 = arith.constant 0 : index
      %29 = vector.load %arg2[%c0_20, %c0_21] : memref<1x128xf32, #tpu.memory_space<vmem>>, vector<1x128xf32>
      %30 = arith.mulf %29, %28 : vector<1x128xf32>
      %c0_22 = arith.constant 0 : index
      %c0_23 = arith.constant 0 : index
      %31 = vector.load %arg4[%c0_22, %c0_23] : memref<1x128xf32, #tpu.memory_space<vmem>>, vector<1x128xf32>
      tpu.vector_store %arg4[%c0_22, %c0_23], %30 {strides = array<i32>} : memref<1x128xf32, #tpu.memory_space<vmem>>, vector<1x128xf32>,
      %c0_24 = arith.constant 0 : index
      %c0_25 = arith.constant 0 : index
      %32 = vector.load %arg3[%c0_24, %c0_25] : memref<1x128xf32, #tpu.memory_space<vmem>>, vector<1x128xf32>
      %33 = arith.mulf %20, %30 : vector<1x128xf32>
      %34 = arith.subf %32, %33 : vector<1x128xf32>
      %c0_26 = arith.constant 0 : index
      %c0_27 = arith.constant 0 : index
      %35 = vector.load %arg5[%c0_26, %c0_27] : memref<1x128xf32, #tpu.memory_space<vmem>>, vector<1x128xf32>
      tpu.vector_store %arg5[%c0_26, %c0_27], %34 {strides = array<i32>} : memref<1x128xf32, #tpu.memory_space<vmem>>, vector<1x128xf32>,
    } else {
    }
    return
  }
  func.func @transform_0(%arg0: i32) -> (i32, i32) {
    %c0_i32 = arith.constant 0 : i32
    %c0_i32_0 = arith.constant 0 : i32
    return %arg0, %c0_i32 : i32, i32
  }
  func.func @transform_1(%arg0: i32) -> (i32, i32) {
    %c0_i32 = arith.constant 0 : i32
    %c0_i32_0 = arith.constant 0 : i32
    %c0_i32_1 = arith.constant 0 : i32
    return %c0_i32, %c0_i32_0 : i32, i32
  }
  func.func @transform_2(%arg0: i32) -> (i32, i32) {
    %c0_i32 = arith.constant 0 : i32
    %c0_i32_0 = arith.constant 0 : i32
    %c0_i32_1 = arith.constant 0 : i32
    return %c0_i32, %c0_i32_0 : i32, i32
  }
  func.func @transform_3(%arg0: i32) -> (i32, i32) {
    %c0_i32 = arith.constant 0 : i32
    %c0_i32_0 = arith.constant 0 : i32
    %c0_i32_1 = arith.constant 0 : i32
    return %c0_i32, %c0_i32_0 : i32, i32
  }
  func.func @transform_4(%arg0: i32) -> (i32, i32) {
    %c0_i32 = arith.constant 0 : i32
    %c0_i32_0 = arith.constant 0 : i32
    %c0_i32_1 = arith.constant 0 : i32
    return %c0_i32, %c0_i32_0 : i32, i32
  }
}

module attributes {stable_mosaic.version = 11 : i64} {
  func.func @_bn_apply_kernel(%arg0: i32, %arg1: memref<32x128xf32, #tpu.memory_space<vmem>>, %arg2: memref<1x128xf32, #tpu.memory_space<vmem>>, %arg3: memref<1x128xf32, #tpu.memory_space<vmem>>, %arg4: memref<32x128xf32, #tpu.memory_space<vmem>>) attributes {dimension_semantics = [#tpu.dimension_semantics<parallel>], iteration_bounds = array<i64: 1>, scalar_prefetch = 0 : i64, scratch_operands = 0 : i64, tpu.core_type = #tpu.core_type<tc>, window_params = [{transform_indices = @transform_0, window_bounds = array<i64: 32, 128>}, {pipeline_mode = #tpu.pipeline_mode<synchronous>, transform_indices = @transform_1, window_bounds = array<i64: 1, 128>}, {pipeline_mode = #tpu.pipeline_mode<synchronous>, transform_indices = @transform_2, window_bounds = array<i64: 1, 128>}, {transform_indices = @transform_3, window_bounds = array<i64: 32, 128>}]} {
    %c0 = arith.constant 0 : index
    %c0_0 = arith.constant 0 : index
    %0 = vector.load %arg1[%c0, %c0_0] : memref<32x128xf32, #tpu.memory_space<vmem>>, vector<32x128xf32>
    %c0_1 = arith.constant 0 : index
    %c0_2 = arith.constant 0 : index
    %1 = vector.load %arg2[%c0_1, %c0_2] : memref<1x128xf32, #tpu.memory_space<vmem>>, vector<1x128xf32>
    %2 = vector.broadcast %1 : vector<1x128xf32> to vector<32x128xf32>
    %3 = arith.mulf %0, %2 : vector<32x128xf32>
    %c0_3 = arith.constant 0 : index
    %c0_4 = arith.constant 0 : index
    %4 = vector.load %arg3[%c0_3, %c0_4] : memref<1x128xf32, #tpu.memory_space<vmem>>, vector<1x128xf32>
    %5 = vector.broadcast %4 : vector<1x128xf32> to vector<32x128xf32>
    %6 = arith.addf %3, %5 : vector<32x128xf32>
    %c0_5 = arith.constant 0 : index
    %c0_6 = arith.constant 0 : index
    %7 = vector.load %arg4[%c0_5, %c0_6] : memref<32x128xf32, #tpu.memory_space<vmem>>, vector<32x128xf32>
    tpu.vector_store %arg4[%c0_5, %c0_6], %6 {strides = array<i32>} : memref<32x128xf32, #tpu.memory_space<vmem>>, vector<32x128xf32>,
    return
  }
  func.func @transform_0(%arg0: i32) -> (i32, i32) {
    %c0_i32 = arith.constant 0 : i32
    %c0_i32_0 = arith.constant 0 : i32
    return %arg0, %c0_i32 : i32, i32
  }
  func.func @transform_1(%arg0: i32) -> (i32, i32) {
    %c0_i32 = arith.constant 0 : i32
    %c0_i32_0 = arith.constant 0 : i32
    %c0_i32_1 = arith.constant 0 : i32
    return %c0_i32, %c0_i32_0 : i32, i32
  }
  func.func @transform_2(%arg0: i32) -> (i32, i32) {
    %c0_i32 = arith.constant 0 : i32
    %c0_i32_0 = arith.constant 0 : i32
    %c0_i32_1 = arith.constant 0 : i32
    return %c0_i32, %c0_i32_0 : i32, i32
  }
  func.func @transform_3(%arg0: i32) -> (i32, i32) {
    %c0_i32 = arith.constant 0 : i32
    %c0_i32_0 = arith.constant 0 : i32
    return %arg0, %c0_i32 : i32, i32
  }
}

</mosaic_0001>

<llo_original>
// kernel: link_batch_norm.2
$region0: #{link_batch_norm.2}
  #allocation0 [shape = 'u32[]', space=smem, size = 0x4, offset = 0x4, fixed_abs, tag = 'smem constant byte address 0x4 - core index']
  #allocation1 [shape = 'u32[144,128]{1,0:T(1,128)}', space=vmem, size = 0x12000, scoped, tag = 'internal scratch']
  #allocation2 [shape = 'f32[1,128]{1,0:T(1,128)}', space=vmem, size = 0x200, scoped, tag = 'scratch operand']
  #allocation3 [shape = 'f32[1,128]{1,0:T(1,128)}', space=vmem, size = 0x200, scoped, tag = 'scratch operand']
  %s0 = inlined_call_operand.vmem [shape: f32[32,128], index: 0, kind: input, shape index: {}]
  %s1 = inlined_call_operand.vmem [shape: f32[1,128], index: 1, kind: input, shape index: {}]
  %s2 = inlined_call_operand.vmem [shape: f32[1,128], index: 2, kind: input, shape index: {}]
  %s3 = inlined_call_operand.vmem [shape: f32[1,128], index: 3, kind: output, shape index: {0}]
  %s4 = inlined_call_operand.vmem [shape: f32[1,128], index: 4, kind: output, shape index: {1}]
  %5 = xla_tuple %s3, %s4
  %s6 = sld [smem:[#allocation0]]
  $region38: #{link_batch_norm.2} parent=0
    _
  %s8 = ssub.s32 1, %s6
  %s9 = scalar_select 0, %s8, %s6
  // Predicated region
  $region2: #{link_batch_norm.2} parent=0 // pred_check
    _
  $region3: #{link_batch_norm.2} parent=0 // pred_check_branch
    %11 = sbr.rel (0) target = $region5
  $region4: #{link_batch_norm.2} parent=0 // pred_region
    _
  $region5: #{link_batch_norm.2} parent=0 // pred_fallthru
    _
  // Predicated region
  $region6: #{link_batch_norm.2} parent=0 // pred_check
    _
  $region7: #{link_batch_norm.2} parent=0 // pred_check_branch
    %13 = sbr.rel (0) target = $region9
  $region8: #{link_batch_norm.2} parent=0 // pred_region
    _
  $region9: #{link_batch_norm.2} parent=0 // pred_fallthru
    _
  // Predicated region
  $region10: #{link_batch_norm.2} parent=0 // pred_check
    _
  $region11: #{link_batch_norm.2} parent=0 // pred_check_branch
    %15 = sbr.rel (0) target = $region13
  $region12: #{link_batch_norm.2} parent=0 // pred_region
    _
  $region13: #{link_batch_norm.2} parent=0 // pred_fallthru
    _
  %p16 = scmp.eq.s32.totalorder 0, 0
  // Predicated region
  $region14: #{link_batch_norm.2} parent=0 // pred_check
    %p17 = pneg %p16
  $region15: #{link_batch_norm.2} parent=0 // pred_check_branch
    %19 = sbr.rel (%p17) target = $region17
  $region16: #{link_batch_norm.2} parent=0 // pred_region
    %20 = vst [vmem:[#allocation2] sm:$0x1] 0.0
    %21 = vst [vmem:[#allocation3] sm:$0x1] 0.0
  $region17: #{link_batch_norm.2} parent=0 // pred_fallthru
    _
  %v22 = vld [vmem:[%s0] sm:$0xff]
  %v23 = vld [vmem:[%s0 + $0x8] sm:$0xff]
  %v24 = vld [vmem:[%s0 + $0x10] sm:$0xff]
  %v25 = vld [vmem:[%s0 + $0x18] sm:$0xff]
  %v26 = vld [vmem:[#allocation2] sm:$0x1]
  %v27 = vadd.f32 %v22, %v23
  %v28 = vadd.f32 %v27, %v24
  %v29 = vadd.f32 %v28, %v25
  %v30 = vrot.slane %v29, 4
  %v31 = vadd.f32 %v29, %v30
  %v32 = vrot.slane %v31, 2
  %v33 = vadd.f32 %v31, %v32
  %v34 = vrot.slane %v33, 1
  %v35 = vadd.f32 %v33, %v34
  %v36 = vadd.f32 %v26, %v35
  %37 = vst [vmem:[#allocation2] sm:$0x1] %v36
  %v38 = vld [vmem:[#allocation3] sm:$0x1]
  %v39 = vmul.f32 %v22, %v22
  %v40 = vmul.f32 %v23, %v23
  %v41 = vmul.f32 %v24, %v24
  %v42 = vmul.f32 %v25, %v25
  %v43 = vadd.f32 %v39, %v40
  %v44 = vadd.f32 %v43, %v41
  %v45 = vadd.f32 %v44, %v42
  %v46 = vrot.slane %v45, 4
  %v47 = vadd.f32 %v45, %v46
  %v48 = vrot.slane %v47, 2
  %v49 = vadd.f32 %v47, %v48
  %v50 = vrot.slane %v49, 1
  %v51 = vadd.f32 %v49, %v50
  %v52 = vadd.f32 %v38, %v51
  %53 = vst [vmem:[#allocation3] sm:$0x1] %v52
  // Predicated region
  $region18: #{link_batch_norm.2} parent=0 // pred_check
    %p54 = pneg %p16
  $region19: #{link_batch_norm.2} parent=0 // pred_check_branch
    %56 = sbr.rel (%p54) target = $region21
  $region20: #{link_batch_norm.2} parent=0 // pred_region
    %v57 = vld [vmem:[#allocation2] sm:$0x1]
    %v58 = vmul.f32 %v57, 0.033333335
    %v59 = vld [vmem:[#allocation3] sm:$0x1]
    %v60 = vmul.f32 %v59, 0.033333335
    %v61 = vmul.f32 %v58, %v58
    %v62 = vsub.f32 %v60, %v61
    %v63 = vadd.f32 %v62, 1e-05
    %v64 = vrsqrt.pop %v63
    %v65 = vld [vmem:[%s1] sm:$0x1]
    %v66 = vmul.f32 %v65, %v64
    %67 = vst [vmem:[%s3] sm:$0x1] %v66
    %v68 = vld [vmem:[%s2] sm:$0x1]
    %v69 = vmul.f32 %v58, %v66
    %v70 = vsub.f32 %v68, %v69
    %71 = vst [vmem:[%s4] sm:$0x1] %v70
  $region21: #{link_batch_norm.2} parent=0 // pred_fallthru
    _
  // Predicated region
  $region22: #{link_batch_norm.2} parent=0 // pred_check
    _
  $region23: #{link_batch_norm.2} parent=0 // pred_check_branch
    %73 = sbr.rel (0) target = $region25
  $region24: #{link_batch_norm.2} parent=0 // pred_region
    _
  $region25: #{link_batch_norm.2} parent=0 // pred_fallthru
    _
  // Predicated region
  $region26: #{link_batch_norm.2} parent=0 // pred_check
    _
  $region27: #{link_batch_norm.2} parent=0 // pred_check_branch
    %75 = sbr.rel (0) target = $region29
  $region28: #{link_batch_norm.2} parent=0 // pred_region
    _
  $region29: #{link_batch_norm.2} parent=0 // pred_fallthru
    _
  // Predicated region
  $region30: #{link_batch_norm.2} parent=0 // pred_check
    _
  $region31: #{link_batch_norm.2} parent=0 // pred_check_branch
    %77 = sbr.rel (0) target = $region33
  $region32: #{link_batch_norm.2} parent=0 // pred_region
    _
  $region33: #{link_batch_norm.2} parent=0 // pred_fallthru
    _
  // Predicated region
  $region34: #{link_batch_norm.2} parent=0 // pred_check
    _
  $region35: #{link_batch_norm.2} parent=0 // pred_check_branch
    %79 = sbr.rel (0) target = $region37
  $region36: #{link_batch_norm.2} parent=0 // pred_region
    _
  $region37: #{link_batch_norm.2} parent=0 // pred_fallthru
    _

// kernel: link_batch_norm.3
$region0: #{link_batch_norm.3}
  #allocation0 [shape = 'u32[]', space=smem, size = 0x4, offset = 0x4, fixed_abs, tag = 'smem constant byte address 0x4 - core index']
  #allocation1 [shape = 'u32[144,128]{1,0:T(1,128)}', space=vmem, size = 0x12000, scoped, tag = 'internal scratch']
  %s0 = inlined_call_operand.vmem [shape: f32[32,128], index: 0, kind: input, shape index: {}]
  %s1 = inlined_call_operand.vmem [shape: f32[1,128], index: 1, kind: input, shape index: {}]
  %s2 = inlined_call_operand.vmem [shape: f32[1,128], index: 2, kind: input, shape index: {}]
  %s3 = inlined_call_operand.vmem [shape: f32[32,128], index: 3, kind: output, shape index: {}]
  %s4 = sld [smem:[#allocation0]]
  $region22: #{link_batch_norm.3} parent=0
    _
  %s6 = ssub.s32 1, %s4
  %s7 = scalar_select 0, %s6, %s4
  // Predicated region
  $region2: #{link_batch_norm.3} parent=0 // pred_check
    _
  $region3: #{link_batch_norm.3} parent=0 // pred_check_branch
    %9 = sbr.rel (0) target = $region5
  $region4: #{link_batch_norm.3} parent=0 // pred_region
    _
  $region5: #{link_batch_norm.3} parent=0 // pred_fallthru
    _
  // Predicated region
  $region6: #{link_batch_norm.3} parent=0 // pred_check
    _
  $region7: #{link_batch_norm.3} parent=0 // pred_check_branch
    %11 = sbr.rel (0) target = $region9
  $region8: #{link_batch_norm.3} parent=0 // pred_region
    _
  $region9: #{link_batch_norm.3} parent=0 // pred_fallthru
    _
  // Predicated region
  $region10: #{link_batch_norm.3} parent=0 // pred_check
    _
  $region11: #{link_batch_norm.3} parent=0 // pred_check_branch
    %13 = sbr.rel (0) target = $region13
  $region12: #{link_batch_norm.3} parent=0 // pred_region
    _
  $region13: #{link_batch_norm.3} parent=0 // pred_fallthru
    _
  %v14 = vld [vmem:[%s0] sm:$0xff]
  %v15 = vld [vmem:[%s0 + $0x8] sm:$0xff]
  %v16 = vld [vmem:[%s0 + $0x10] sm:$0xff]
  %v17 = vld [vmem:[%s0 + $0x18] sm:$0xff]
  %v18 = vld [vmem:[%s1] sm:$0x1]
  %v20 = vlaneseq
  %v21 = vshrl.u32 %v20, 7
  %v22 = vsub.s32 0, %v21
  %v23 = vrot.slane %v18, %v22
  %v25 = vmul.f32 %v14, %v23
  %v26 = vmul.f32 %v15, %v23
  %v27 = vmul.f32 %v16, %v23
  %v28 = vmul.f32 %v17, %v23
  %v29 = vld [vmem:[%s2] sm:$0x1]
  %v31 = vlaneseq
  %v32 = vshrl.u32 %v31, 7
  %v33 = vsub.s32 0, %v32
  %v34 = vrot.slane %v29, %v33
  %v36 = vadd.f32 %v25, %v34
  %v37 = vadd.f32 %v26, %v34
  %v38 = vadd.f32 %v27, %v34
  %v39 = vadd.f32 %v28, %v34
  %40 = vst [vmem:[%s3] sm:$0xff] %v36
  %41 = vst [vmem:[%s3 + $0x8] sm:$0xff] %v37
  %42 = vst [vmem:[%s3 + $0x10] sm:$0xff] %v38
  %43 = vst [vmem:[%s3 + $0x18] sm:$0xff] %v39
  // Predicated region
  $region14: #{link_batch_norm.3} parent=0 // pred_check
    _
  $region15: #{link_batch_norm.3} parent=0 // pred_check_branch
    %45 = sbr.rel (0) target = $region17
  $region16: #{link_batch_norm.3} parent=0 // pred_region
    _
  $region17: #{link_batch_norm.3} parent=0 // pred_fallthru
    _
  // Predicated region
  $region18: #{link_batch_norm.3} parent=0 // pred_check
    _
  $region19: #{link_batch_norm.3} parent=0 // pred_check_branch
    %47 = sbr.rel (0) target = $region21
  $region20: #{link_batch_norm.3} parent=0 // pred_region
    _
  $region21: #{link_batch_norm.3} parent=0 // pred_fallthru
    _

</llo_original>
